<compile_context>
chip_gen: v7x
topology: tpu7x:2x2x1
jax: 0.10.0
libtpu: 0.0.40
codegen_flags: <defaults>
</compile_context>

<pallas_src>
import jax
import jax.numpy as jnp
from jax.experimental import pallas as pl
from jax.experimental.pallas import tpu as pltpu


def _bilinear_weight_matrix(out_size: int, in_size: int) -> jnp.ndarray:
    """Dense (out_size, in_size) matrix reproducing PyTorch bilinear
    (align_corners=False, antialias=False) 1-D interpolation along one axis."""
    scale = in_size / out_size
    dst = jnp.arange(out_size, dtype=jnp.float32)
    src = jnp.maximum((dst + 0.5) * scale - 0.5, 0.0)   # PyTorch clamps src >= 0
    i0f = jnp.floor(src)
    lam = src - i0f
    i0 = jnp.minimum(i0f.astype(jnp.int32), in_size - 1)
    i1 = jnp.minimum(i0 + 1, in_size - 1)
    rows = jnp.arange(out_size)
    w = jnp.zeros((out_size, in_size), jnp.float32)
    w = w.at[rows, i0].add(1.0 - lam)
    w = w.at[rows, i1].add(lam)
    return w


def _vmem_capacity_bytes() -> int:
    try:
        return int(pltpu.get_tpu_info().vmem_capacity_bytes)
    except Exception:
        return 64 << 20   # conservative fallback (v7x-sized)


def _pick_tile_h(dh: int, dw: int, c2: int, itemsize: int,
                 target_bytes: int) -> int:
    """Multiple-of-8 H tile such that (c2, tile_h, dw) output blocks stay near
    `target_bytes` AND the grid has >= 2 steps whenever dh >= 16 (so both v7x
    TensorCores get work).  Ragged last blocks are handled by pl.cdiv."""
    if dh <= 8:
        return dh                                   # block == full dim
    row_bytes = max(1, c2 * dw * itemsize)
    by_vmem = max(8, (target_bytes // row_bytes) // 8 * 8)
    by_grid = max(8, (dh // 2) // 8 * 8) if dh >= 16 else 8
    return int(min(by_vmem, by_grid))


def _pos_embed_kernel(col_t_ref, ww_t_ref, sy_ref, out_ref):
    # col_t_ref: (C, sz)      col_embed.weight, channel-first
    # ww_t_ref : (sz, dw)     bilinear weights along W (transposed)
    # sy_ref   : (C, TH, 1)   precomputed y-half (row_embed interp along H) tile
    # out_ref  : (2C, TH, dw) NCHW output tile (channel-first, lane dim = dw)
    c = col_t_ref.shape[0]
    th = out_ref.shape[1]
    dw = out_ref.shape[2]

    # x-half: 1-D interpolation along W on the MXU, already channel-first
    # (C, dw).  Constant along H -> pure sublane broadcast into the store.
    sx_t = jnp.dot(col_t_ref[...], ww_t_ref[...],
                   preferred_element_type=jnp.float32)            # (C, dw)
    out_ref[:c, :, :] = jnp.broadcast_to(
        sx_t.astype(out_ref.dtype)[:, None, :], (c, th, dw))

    # y-half: constant along W -> pure lane broadcast of the prefetched
    # (C, TH, 1) operand (no in-kernel reduce, no lane-padded intermediate).
    out_ref[c:, :, :] = jnp.broadcast_to(
        sy_ref[...].astype(out_ref.dtype), (c, th, dw))


def position_embedding_learned(bs: int, dh: int, dw: int,
                               col_weight: jnp.ndarray,
                               row_weight: jnp.ndarray,
                               *, out_dtype=jnp.float32) -> jnp.ndarray:
    """Returns (bs, 2*num_pos_feats, dh, dw), matching the PyTorch module.
    out_dtype=jnp.bfloat16 halves the writeback traffic if tolerated."""
    sz, c = col_weight.shape
    assert row_weight.shape == (sz, c)

    # Channel-first operands so the in-kernel matmul result is already (C, dw).
    col_t = col_weight.T                                  # (C, sz)
    ww_t = _bilinear_weight_matrix(dw, sz).T              # (sz, dw)
    wh = _bilinear_weight_matrix(dh, sz)                  # (dh, sz)
    # y-half precompute (tiny: C*dh*sz flops, done once), laid out (C, dh, 1)
    # so the per-tile kernel store is a pure lane broadcast.
    sy = jnp.dot(row_weight.T, wh.T,
                 precision=jax.lax.Precision.HIGHEST)[:, :, None]  # (C, dh, 1)

    itemsize = jnp.dtype(out_dtype).itemsize
    vmem_cap = _vmem_capacity_bytes()
    target_bytes = (8 << 20) if vmem_cap >= (96 << 20) else (4 << 20)
    tile_h = _pick_tile_h(dh, dw, 2 * c, itemsize, target_bytes)
    grid = (pl.cdiv(dh, tile_h),)

    out_block_bytes = 2 * c * tile_h * dw * itemsize
    vmem_limit = int(min(48 << 20, max(32 << 20, 6 * out_block_bytes)))

    # TODO(synk): for hot shapes with dw << 128, present the output as a
    # flattened (2C, dh*dw) slab so stores are lane-dense instead of masked.
    pos = pl.pallas_call(
        _pos_embed_kernel,
        grid=grid,
        in_specs=[
            pl.BlockSpec((c, sz), lambda i: (0, 0)),            # col_t (whole)
            pl.BlockSpec((sz, dw), lambda i: (0, 0)),           # ww_t  (whole)
            pl.BlockSpec((c, tile_h, 1), lambda i: (0, i, 0)),  # sy    (H tile)
        ],
        out_specs=pl.BlockSpec((2 * c, tile_h, dw), lambda i: (0, i, 0)),
        out_shape=jax.ShapeDtypeStruct((2 * c, dh, dw), out_dtype),
        compiler_params=pltpu.CompilerParams(
            dimension_semantics=("parallel",),
            vmem_limit_bytes=vmem_limit),
    )(col_t, ww_t, sy)

    # Batch replication kept lazy (identical data; avoid bs x HBM writes).
    return jnp.broadcast_to(pos[None], (bs, 2 * c, dh, dw))


def _reference_nchw(bs, dh, dw, col_weight, row_weight):
    """Pure-JAX reference: full (sz, sz, 2C) grid + exact separable bilinear."""
    sz, c = col_weight.shape
    wh = _bilinear_weight_matrix(dh, sz)
    ww = _bilinear_weight_matrix(dw, sz)
    pos_full = jnp.concatenate(
        [jnp.broadcast_to(col_weight[None, :, :], (sz, sz, c)),
         jnp.broadcast_to(row_weight[:, None, :], (sz, sz, c))], axis=-1)
    ref = jnp.einsum('ai,bj,ijc->cab', wh, ww, pos_full,
                     precision=jax.lax.Precision.HIGHEST)        # (2C, dh, dw)
    return jnp.broadcast_to(ref[None], (bs, 2 * c, dh, dw))


if __name__ == "__main__":
    key = jax.random.PRNGKey(0)
    k_row, k_col = jax.random.split(key)

    # Case 1: small, odd-sized destination -> ragged H grid (tile 8, 2 steps).
    num_pos_feats, sz = 16, 16
    bs, dh, dw = 2, 12, 20
    row_w = jax.random.uniform(k_row, (sz, num_pos_feats), dtype=jnp.float32)
    col_w = jax.random.uniform(k_col, (sz, num_pos_feats), dtype=jnp.float32)
    out = jax.block_until_ready(
        position_embedding_learned(bs, dh, dw, col_w, row_w))
    assert out.shape == (bs, 2 * num_pos_feats, dh, dw), out.shape
    assert out.dtype == jnp.float32
    ref = _reference_nchw(bs, dh, dw, col_w, row_w)
    err1 = float(jnp.max(jnp.abs(out - ref)))
    assert err1 < 1e-4, f"case 1 max err {err1}"

    # Case 2: lane-dense dw (=128) and a real multi-tile H grid.
    num_pos_feats, sz = 64, 20
    bs, dh, dw = 1, 256, 128
    row_w = jax.random.uniform(k_row, (sz, num_pos_feats), dtype=jnp.float32)
    col_w = jax.random.uniform(k_col, (sz, num_pos_feats), dtype=jnp.float32)
    out = jax.block_until_ready(
        position_embedding_learned(bs, dh, dw, col_w, row_w))
    assert out.shape == (bs, 2 * num_pos_feats, dh, dw), out.shape
    ref = _reference_nchw(bs, dh, dw, col_w, row_w)
    err2 = float(jnp.max(jnp.abs(out - ref)))
    assert err2 < 1e-4, f"case 2 max err {err2}"

    # Case 3: bf16 output path (halves HBM writeback) with loose tolerance.
    out_bf16 = jax.block_until_ready(
        position_embedding_learned(bs, dh, dw, col_w, row_w,
                                   out_dtype=jnp.bfloat16))
    assert out_bf16.dtype == jnp.bfloat16
    err3 = float(jnp.max(jnp.abs(out_bf16.astype(jnp.float32) - ref)))
    assert err3 < 2e-2, f"case 3 max err {err3}"

    print("KERNEL_OK")
</pallas_src>

<mosaic_0001>
module attributes {stable_mosaic.version = 11 : i64} {
  func.func @_pos_embed_kernel(%arg0: i32, %arg1: memref<16x16xf32, #tpu.memory_space<vmem>>, %arg2: memref<16x20xf32, #tpu.memory_space<vmem>>, %arg3: memref<16x8x1xf32, #tpu.memory_space<vmem>>, %arg4: memref<32x8x20xf32, #tpu.memory_space<vmem>>) attributes {dimension_semantics = [#tpu.dimension_semantics<parallel>], iteration_bounds = array<i64: 2>, scalar_prefetch = 0 : i64, scratch_operands = 0 : i64, tpu.core_type = #tpu.core_type<tc>, window_params = [{pipeline_mode = #tpu.pipeline_mode<synchronous>, transform_indices = @transform_0, window_bounds = array<i64: 16, 16>}, {pipeline_mode = #tpu.pipeline_mode<synchronous>, transform_indices = @transform_1, window_bounds = array<i64: 16, 20>}, {transform_indices = @transform_2, window_bounds = array<i64: 16, 8, 1>}, {transform_indices = @transform_3, window_bounds = array<i64: 32, 8, 20>}]} {
    %c0 = arith.constant 0 : index
    %c0_0 = arith.constant 0 : index
    %0 = vector.load %arg1[%c0, %c0_0] : memref<16x16xf32, #tpu.memory_space<vmem>>, vector<16x16xf32>
    %c0_1 = arith.constant 0 : index
    %c0_2 = arith.constant 0 : index
    %1 = vector.load %arg2[%c0_1, %c0_2] : memref<16x20xf32, #tpu.memory_space<vmem>>, vector<16x20xf32>
    %cst = arith.constant dense<0.000000e+00> : vector<16x20xf32>
    %2 = tpu.matmul %0, %1, %cst {dimension_numbers = #tpu.dot_dimension_numbers<[1], [0], [0], [1], [0, 0, 1, 1], [], []>} : vector<16x16xf32>, vector<16x20xf32>, vector<16x20xf32> -> vector<16x20xf32>
    %3 = vector.shape_cast %2 : vector<16x20xf32> to vector<16x1x20xf32>
    %4 = vector.shape_cast %3 : vector<16x1x20xf32> to vector<16x1x20xf32>
    %5 = vector.broadcast %4 : vector<16x1x20xf32> to vector<16x8x20xf32>
    %c0_3 = arith.constant 0 : index
    %c0_4 = arith.constant 0 : index
    %c0_5 = arith.constant 0 : index
    %6 = vector.load %arg4[%c0_3, %c0_4, %c0_5] : memref<32x8x20xf32, #tpu.memory_space<vmem>>, vector<16x8x20xf32>
    tpu.vector_store %arg4[%c0_3, %c0_4, %c0_5], %5 {strides = array<i32>} : memref<32x8x20xf32, #tpu.memory_space<vmem>>, vector<16x8x20xf32>,
    %c0_6 = arith.constant 0 : index
    %c0_7 = arith.constant 0 : index
    %c0_8 = arith.constant 0 : index
    %7 = vector.load %arg3[%c0_6, %c0_7, %c0_8] : memref<16x8x1xf32, #tpu.memory_space<vmem>>, vector<16x8x1xf32>
    %8 = vector.shape_cast %7 : vector<16x8x1xf32> to vector<16x8x1xf32>
    %9 = vector.broadcast %8 : vector<16x8x1xf32> to vector<16x8x20xf32>
    %c16 = arith.constant 16 : index
    %c0_9 = arith.constant 0 : index
    %c0_10 = arith.constant 0 : index
    %10 = vector.load %arg4[%c16, %c0_9, %c0_10] : memref<32x8x20xf32, #tpu.memory_space<vmem>>, vector<16x8x20xf32>
    tpu.vector_store %arg4[%c16, %c0_9, %c0_10], %9 {strides = array<i32>} : memref<32x8x20xf32, #tpu.memory_space<vmem>>, vector<16x8x20xf32>,
    return
  }
  func.func @transform_0(%arg0: i32) -> (i32, i32) {
    %c0_i32 = arith.constant 0 : i32
    %c0_i32_0 = arith.constant 0 : i32
    %c0_i32_1 = arith.constant 0 : i32
    return %c0_i32, %c0_i32_0 : i32, i32
  }
  func.func @transform_1(%arg0: i32) -> (i32, i32) {
    %c0_i32 = arith.constant 0 : i32
    %c0_i32_0 = arith.constant 0 : i32
    %c0_i32_1 = arith.constant 0 : i32
    return %c0_i32, %c0_i32_0 : i32, i32
  }
  func.func @transform_2(%arg0: i32) -> (i32, i32, i32) {
    %c0_i32 = arith.constant 0 : i32
    %c0_i32_0 = arith.constant 0 : i32
    %c0_i32_1 = arith.constant 0 : i32
    return %c0_i32, %arg0, %c0_i32_0 : i32, i32, i32
  }
  func.func @transform_3(%arg0: i32) -> (i32, i32, i32) {
    %c0_i32 = arith.constant 0 : i32
    %c0_i32_0 = arith.constant 0 : i32
    %c0_i32_1 = arith.constant 0 : i32
    return %c0_i32, %arg0, %c0_i32_0 : i32, i32, i32
  }
}

</mosaic_0001>

<llo_original>
// kernel: tpu_custom_call.1
$region0: #{tpu_custom_call.1}
  #allocation0 [shape = 'u32[]', space=smem, size = 0x4, offset = 0x4, fixed_abs, tag = 'smem constant byte address 0x4 - core index']
  #allocation1 [shape = 'u32[144,128]{1,0:T(1,128)}', space=vmem, size = 0x12000, scoped, tag = 'internal scratch']
  %s0 = inlined_call_operand.vmem [shape: f32[16,16], index: 0, kind: input, shape index: {}]
  %s1 = inlined_call_operand.vmem [shape: f32[16,20], index: 1, kind: input, shape index: {}]
  %s2 = inlined_call_operand.vmem [shape: f32[16,12,1], index: 2, kind: input, shape index: {}]
  %s3 = inlined_call_operand.vmem [shape: f32[32,12,20], index: 3, kind: output, shape index: {}]
  %s4 = sld [smem:[#allocation0]]
  $region117: #{tpu_custom_call.1} parent=0
    _
  %s6 = ssub.s32 1, %s4
  %s7 = scalar_select 0, %s6, %s4
  $region1: #{tpu_custom_call.1} parent=0
    #allocation2 [shape = 'u8[131072]{0}', space=vmem, size = 0x20000, scoped, tag = 'input window, operand 2']
    #allocation3 [shape = 'u8[262144]{0}', space=vmem, size = 0x40000, scoped, tag = 'output window, operand 0']
    loop: start=0, step=1, limit=4
    $region2: #{tpu_custom_call.1} parent=1 // loop_pre_header
      _
    $region3: #{tpu_custom_call.1} parent=1 // loop_header
      %s9 = sphi 0, %s13
      %p10 = scmp.ge.s32.totalorder %s9, 4
      %s17 = sphi 0, %s17
      %s19 = sphi 0, %s17
      %s20 = sphi 0, %s19
      %s34 = sphi 0, %s20
      %s38 = sphi 0, %s38
      %s40 = sphi 0, %s38
      %s41 = sphi 0, %s40
      %s55 = sphi 0, %s41
      %s61 = sphi 0, %s63
      %s64 = sphi 0, %s61
      %s65 = sphi 0, %s64
      %s81 = sphi 0, %s65
      %s87 = sphi 0, %s89
      %s90 = sphi 0, %s87
      %s91 = sphi 0, %s90
      %s107 = sphi 0, %s91
    $region4: #{tpu_custom_call.1} parent=1 // loop_header_branch
      %12 = sbr.rel (%p10) target = $region8
    $region5: #{tpu_custom_call.1} parent=1 // loop_body
      %s14 = ssub.s32 %s9, 1
      %s15 = ssub.s32 %s9, 2
      %s16 = sadd.s32 %s9, 1
      %s18 = sadd.s32 %s17, 1
      %p21 = scmp.eq.s32.totalorder %s9, 1
      %p22 = scmp.ne.s32.totalorder %s17, %s19
      %p23 = scmp.eq.s32.totalorder %s9, 0
      %p24 = por %p22, %p23
      %p25 = scmp.ne.s32.totalorder %s17, %s19
      %p26 = scmp.eq.s32.totalorder %s14, 1
      %p27 = por %p25, %p26
      %p28 = scmp.ne.s32.totalorder %s19, %s20
      %p29 = scmp.eq.s32.totalorder %s14, 0
      %p30 = por %p28, %p29
      %p31 = scmp.ne.s32.totalorder %s19, %s20
      %p32 = scmp.eq.s32.totalorder %s15, 1
      %p33 = por %p31, %p32
      %p35 = scmp.ne.s32.totalorder %s20, %s34
      %p36 = scmp.eq.s32.totalorder %s15, 0
      %p37 = por %p35, %p36
      %s39 = sadd.s32 %s38, 1
      %p42 = scmp.eq.s32.totalorder %s9, 1
      %p43 = scmp.ne.s32.totalorder %s38, %s40
      %p44 = scmp.eq.s32.totalorder %s9, 0
      %p45 = por %p43, %p44
      %p46 = scmp.ne.s32.totalorder %s38, %s40
      %p47 = scmp.eq.s32.totalorder %s14, 1
      %p48 = por %p46, %p47
      %p49 = scmp.ne.s32.totalorder %s40, %s41
      %p50 = scmp.eq.s32.totalorder %s14, 0
      %p51 = por %p49, %p50
      %p52 = scmp.ne.s32.totalorder %s40, %s41
      %p53 = scmp.eq.s32.totalorder %s15, 1
      %p54 = por %p52, %p53
      %p56 = scmp.ne.s32.totalorder %s41, %s55
      %p57 = scmp.eq.s32.totalorder %s15, 0
      %p58 = por %p56, %p57
      %s59 = ssub.s32 %s9, %s16
      %p60 = scmp.eq.s32.totalorder %s59, 0
      %s62 = sadd.s32 %s61, 1
      %s63 = scalar_select %p60, %s61, %s62
      %p66 = pneg %p60
      %p67 = scmp.eq.s32.totalorder %s9, 1
      %p68 = por %p66, %p67
      %p69 = scmp.ne.s32.totalorder %s61, %s64
      %p70 = scmp.eq.s32.totalorder %s9, 0
      %p71 = por %p69, %p70
      %p72 = scmp.ne.s32.totalorder %s61, %s64
      %p73 = scmp.eq.s32.totalorder %s14, 1
      %p74 = por %p72, %p73
      %p75 = scmp.ne.s32.totalorder %s64, %s65
      %p76 = scmp.eq.s32.totalorder %s14, 0
      %p77 = por %p75, %p76
      %p78 = scmp.ne.s32.totalorder %s64, %s65
      %p79 = scmp.eq.s32.totalorder %s15, 1
      %p80 = por %p78, %p79
      %p82 = scmp.ne.s32.totalorder %s65, %s81
      %p83 = scmp.eq.s32.totalorder %s15, 0
      %p84 = por %p82, %p83
      %s85 = ssub.s32 %s9, %s16
      %p86 = scmp.eq.s32.totalorder %s85, 0
      %s88 = sadd.s32 %s87, 1
      %s89 = scalar_select %p86, %s87, %s88
      %p92 = pneg %p86
      %p93 = scmp.eq.s32.totalorder %s9, 1
      %p94 = por %p92, %p93
      %p95 = scmp.ne.s32.totalorder %s87, %s90
      %p96 = scmp.eq.s32.totalorder %s9, 0
      %p97 = por %p95, %p96
      %p98 = scmp.ne.s32.totalorder %s87, %s90
      %p99 = scmp.eq.s32.totalorder %s14, 1
      %p100 = por %p98, %p99
      %p101 = scmp.ne.s32.totalorder %s90, %s91
      %p102 = scmp.eq.s32.totalorder %s14, 0
      %p103 = por %p101, %p102
      %p104 = scmp.ne.s32.totalorder %s90, %s91
      %p105 = scmp.eq.s32.totalorder %s15, 1
      %p106 = por %p104, %p105
      %p108 = scmp.ne.s32.totalorder %s91, %s107
      %p109 = scmp.eq.s32.totalorder %s15, 0
      %p110 = por %p108, %p109
      %p111 = scmp.le.s32.totalorder 1, %s9
      %p112 = scmp.lt.s32.totalorder %s9, 3
      %p113 = pnand %p111, %p112
      %p114 = pneg %p113
      // Predicated region
      $region9: #{tpu_custom_call.1} parent=5 // pred_check
        _
      $region10: #{tpu_custom_call.1} parent=5 // pred_check_branch
        %116 = sbr.rel (%p113) target = $region12
      $region11: #{tpu_custom_call.1} parent=5 // pred_region
        %s117 = ssub.s32 %s9, 1
        // Predicated region
        $region13: #{tpu_custom_call.1} parent=11 // pred_check
          %p118 = pneg %p30
        $region14: #{tpu_custom_call.1} parent=11 // pred_check_branch
          %120 = sbr.rel (%p118) target = $region16
        $region15: #{tpu_custom_call.1} parent=11 // pred_region
          _
        $region16: #{tpu_custom_call.1} parent=11 // pred_fallthru
          _
        // Predicated region
        $region17: #{tpu_custom_call.1} parent=11 // pred_check
          %p121 = pneg %p51
        $region18: #{tpu_custom_call.1} parent=11 // pred_check_branch
          %123 = sbr.rel (%p121) target = $region20
        $region19: #{tpu_custom_call.1} parent=11 // pred_region
          _
        $region20: #{tpu_custom_call.1} parent=11 // pred_fallthru
          _
      $region12: #{tpu_custom_call.1} parent=5 // pred_fallthru
        _
      %p124 = scmp.lt.s32.totalorder %s9, 2
      // Predicated region
      $region21: #{tpu_custom_call.1} parent=5 // pred_check
        %p125 = pneg %p124
      $region22: #{tpu_custom_call.1} parent=5 // pred_check_branch
        %127 = sbr.rel (%p125) target = $region24
      $region23: #{tpu_custom_call.1} parent=5 // pred_region
        // Predicated region
        $region25: #{tpu_custom_call.1} parent=23 // pred_check
          %p128 = pneg %p71
        $region26: #{tpu_custom_call.1} parent=23 // pred_check_branch
          %130 = sbr.rel (%p128) target = $region28
        $region27: #{tpu_custom_call.1} parent=23 // pred_region
          %s131 = sand.u32 %s61, 1
          %s132 = sand.u32 %s61, 1
          %s133 = smul.addr %s132, 128
          %s134 = scalar_lea.vmem [#allocation2], %s133
          %s135 = smul.addr %s9, 8
          %s136 = scalar_lea.vmem %s2, %s135
          // Predicated region
          $region29: #{tpu_custom_call.1} parent=27 // pred_check
            _
          $region30: #{tpu_custom_call.1} parent=27 // pred_check_branch
            %138 = sbr.rel (0) target = $region32
          $region31: #{tpu_custom_call.1} parent=27 // pred_region
            // Predicated region
            $region33: #{tpu_custom_call.1} parent=31 // pred_check
              _
            $region34: #{tpu_custom_call.1} parent=31 // pred_check_branch
              %140 = sbr.rel (0) target = $region36
            $region35: #{tpu_custom_call.1} parent=31 // pred_region
              // Predicated region
              $region48: #{tpu_custom_call.1} parent=35 // pred_check
                _
              $region49: #{tpu_custom_call.1} parent=35 // pred_check_branch
                %185 = sbr.rel (0) target = $region51
              $region50: #{tpu_custom_call.1} parent=35 // pred_region
                loop: start=0, step=1, limit=1
                $region52: #{tpu_custom_call.1} parent=50 // loop_pre_header
                  _
                $region53: #{tpu_custom_call.1} parent=50 // loop_header
                  %s187 = sphi 0, %s191
                  %p188 = scmp.ge.s32.totalorder %s187, 1
                  %s192 = sphi %s136, %s136
                  %s193 = sphi %s134, %s134
                $region54: #{tpu_custom_call.1} parent=50 // loop_header_branch
                  %190 = sbr.rel (%p188) target = $region58
                $region55: #{tpu_custom_call.1} parent=50 // loop_body
                  %v194 = vld [vmem:[%s192] sm:$0xff]
                  %195 = vst [vmem:[%s193] sm:$0xff] %v194
                  %v196 = vld [vmem:[%s192 + $0x10] sm:$0xff]
                  %197 = vst [vmem:[%s193 + $0x8] sm:$0xff] %v196
                  %v198 = vld [vmem:[%s192 + $0x20] sm:$0xff]
                  %199 = vst [vmem:[%s193 + $0x10] sm:$0xff] %v198
                  %v200 = vld [vmem:[%s192 + $0x30] sm:$0xff]
                  %201 = vst [vmem:[%s193 + $0x18] sm:$0xff] %v200
                  %v202 = vld [vmem:[%s192 + $0x40] sm:$0xff]
                  %203 = vst [vmem:[%s193 + $0x20] sm:$0xff] %v202
                  %v204 = vld [vmem:[%s192 + $0x50] sm:$0xff]
                  %205 = vst [vmem:[%s193 + $0x28] sm:$0xff] %v204
                  %v206 = vld [vmem:[%s192 + $0x60] sm:$0xff]
                  %207 = vst [vmem:[%s193 + $0x30] sm:$0xff] %v206
                  %v208 = vld [vmem:[%s192 + $0x70] sm:$0xff]
                  %209 = vst [vmem:[%s193 + $0x38] sm:$0xff] %v208
                  %v210 = vld [vmem:[%s192 + $0x80] sm:$0xff]
                  %211 = vst [vmem:[%s193 + $0x40] sm:$0xff] %v210
                  %v212 = vld [vmem:[%s192 + $0x90] sm:$0xff]
                  %213 = vst [vmem:[%s193 + $0x48] sm:$0xff] %v212
                  %v214 = vld [vmem:[%s192 + $0xa0] sm:$0xff]
                  %215 = vst [vmem:[%s193 + $0x50] sm:$0xff] %v214
                  %v216 = vld [vmem:[%s192 + $0xb0] sm:$0xff]
                  %217 = vst [vmem:[%s193 + $0x58] sm:$0xff] %v216
                  %v218 = vld [vmem:[%s192 + $0xc0] sm:$0xff]
                  %219 = vst [vmem:[%s193 + $0x60] sm:$0xff] %v218
                  %v220 = vld [vmem:[%s192 + $0xd0] sm:$0xff]
                  %221 = vst [vmem:[%s193 + $0x68] sm:$0xff] %v220
                  %v222 = vld [vmem:[%s192 + $0xe0] sm:$0xff]
                  %223 = vst [vmem:[%s193 + $0x70] sm:$0xff] %v222
                  %v224 = vld [vmem:[%s192 + $0xf0] sm:$0xff]
                  %225 = vst [vmem:[%s193 + $0x78] sm:$0xff] %v224
                $region56: #{tpu_custom_call.1} parent=50 // loop_footer
                  %s191 = sadd.s32 1, %s187
                $region57: #{tpu_custom_call.1} parent=50 // loop_footer_branch
                  %186 = sbr.rel target = $region53
                $region58: #{tpu_custom_call.1} parent=50 // loop_exit
                  _
              $region51: #{tpu_custom_call.1} parent=35 // pred_fallthru
                _
              // Predicated region
              $region59: #{tpu_custom_call.1} parent=35 // pred_check
                _
              $region60: #{tpu_custom_call.1} parent=35 // pred_check_branch
                %227 = sbr.rel target = $region62
              $region61: #{tpu_custom_call.1} parent=35 // pred_region
                _
              $region62: #{tpu_custom_call.1} parent=35 // pred_fallthru
                _
            $region36: #{tpu_custom_call.1} parent=31 // pred_fallthru
              _
            // Predicated region
            $region37: #{tpu_custom_call.1} parent=31 // pred_check
              _
            $region38: #{tpu_custom_call.1} parent=31 // pred_check_branch
              %142 = sbr.rel target = $region40
            $region39: #{tpu_custom_call.1} parent=31 // pred_region
              loop: start=0, step=1, limit=1
              $region41: #{tpu_custom_call.1} parent=39 // loop_pre_header
                _
              $region42: #{tpu_custom_call.1} parent=39 // loop_header
                %s145 = sphi 0, %s149
                %p146 = scmp.ge.s32.totalorder %s145, 1
                %s150 = sphi %s136, %s136
                %s151 = sphi %s134, %s134
              $region43: #{tpu_custom_call.1} parent=39 // loop_header_branch
                %148 = sbr.rel (%p146) target = $region47
              $region44: #{tpu_custom_call.1} parent=39 // loop_body
                %v152 = vld [vmem:[%s150] sm:$0xff]
                %153 = vst [vmem:[%s151] sm:$0xff] %v152
                %v154 = vld [vmem:[%s150 + $0x10] sm:$0xff]
                %155 = vst [vmem:[%s151 + $0x8] sm:$0xff] %v154
                %v156 = vld [vmem:[%s150 + $0x20] sm:$0xff]
                %157 = vst [vmem:[%s151 + $0x10] sm:$0xff] %v156
                %v158 = vld [vmem:[%s150 + $0x30] sm:$0xff]
                %159 = vst [vmem:[%s151 + $0x18] sm:$0xff] %v158
                %v160 = vld [vmem:[%s150 + $0x40] sm:$0xff]
                %161 = vst [vmem:[%s151 + $0x20] sm:$0xff] %v160
                %v162 = vld [vmem:[%s150 + $0x50] sm:$0xff]
                %163 = vst [vmem:[%s151 + $0x28] sm:$0xff] %v162
                %v164 = vld [vmem:[%s150 + $0x60] sm:$0xff]
                %165 = vst [vmem:[%s151 + $0x30] sm:$0xff] %v164
                %v166 = vld [vmem:[%s150 + $0x70] sm:$0xff]
                %167 = vst [vmem:[%s151 + $0x38] sm:$0xff] %v166
                %v168 = vld [vmem:[%s150 + $0x80] sm:$0xff]
                %169 = vst [vmem:[%s151 + $0x40] sm:$0xff] %v168
                %v170 = vld [vmem:[%s150 + $0x90] sm:$0xff]
                %171 = vst [vmem:[%s151 + $0x48] sm:$0xff] %v170
                %v172 = vld [vmem:[%s150 + $0xa0] sm:$0xff]
                %173 = vst [vmem:[%s151 + $0x50] sm:$0xff] %v172
                %v174 = vld [vmem:[%s150 + $0xb0] sm:$0xff]
                %175 = vst [vmem:[%s151 + $0x58] sm:$0xff] %v174
                %v176 = vld [vmem:[%s150 + $0xc0] sm:$0xff]
                %177 = vst [vmem:[%s151 + $0x60] sm:$0xff] %v176
                %v178 = vld [vmem:[%s150 + $0xd0] sm:$0xff]
                %179 = vst [vmem:[%s151 + $0x68] sm:$0xff] %v178
                %v180 = vld [vmem:[%s150 + $0xe0] sm:$0xff]
                %181 = vst [vmem:[%s151 + $0x70] sm:$0xff] %v180
                %v182 = vld [vmem:[%s150 + $0xf0] sm:$0xff]
                %183 = vst [vmem:[%s151 + $0x78] sm:$0xff] %v182
              $region45: #{tpu_custom_call.1} parent=39 // loop_footer
                %s149 = sadd.s32 1, %s145
              $region46: #{tpu_custom_call.1} parent=39 // loop_footer_branch
                %144 = sbr.rel target = $region42
              $region47: #{tpu_custom_call.1} parent=39 // loop_exit
                _
            $region40: #{tpu_custom_call.1} parent=31 // pred_fallthru
              _
          $region32: #{tpu_custom_call.1} parent=27 // pred_fallthru
            _
          %228 = vnop
        $region28: #{tpu_custom_call.1} parent=23 // pred_fallthru
          _
      $region24: #{tpu_custom_call.1} parent=5 // pred_fallthru
        _
      %p229 = scmp.le.s32.totalorder 1, %s9
      %p230 = scmp.lt.s32.totalorder %s9, 3
      %p231 = pnand %p229, %p230
      %p232 = pneg %p231
      // Predicated region
      $region63: #{tpu_custom_call.1} parent=5 // pred_check
        _
      $region64: #{tpu_custom_call.1} parent=5 // pred_check_branch
        %234 = sbr.rel (%p231) target = $region66
      $region65: #{tpu_custom_call.1} parent=5 // pred_region
        %s235 = ssub.s32 %s9, 1
        %s236 = sand.u32 %s64, 1
        %s237 = sand.u32 %s64, 1
        %s238 = smul.addr %s237, 128
        %s239 = scalar_lea.vmem [#allocation2], %s238
        // Predicated region
        $region67: #{tpu_custom_call.1} parent=65 // pred_check
          %p240 = pneg %p77
        $region68: #{tpu_custom_call.1} parent=65 // pred_check_branch
          %242 = sbr.rel (%p240) target = $region70
        $region69: #{tpu_custom_call.1} parent=65 // pred_region
          _
        $region70: #{tpu_custom_call.1} parent=65 // pred_fallthru
          _
        %p243 = pneg %p30
        %p244 = pneg %p27
        %p245 = pneg %p51
        %p246 = pneg %p48
        %s247 = sand.u32 %s64, 1
        %s248 = sand.u32 %s64, 1
        %s249 = smul.addr %s248, 128
        %s250 = scalar_lea.vmem [#allocation2], %s249
        %p251 = pneg %p77
        %p252 = pneg %p74
        %p253 = pneg %p103
        %p254 = pneg %p100
        %s255 = sand.u32 %s90, 1
        %s256 = sand.u32 %s90, 1
        %s257 = smul.addr %s256, 256
        %s258 = scalar_lea.vmem [#allocation3], %s257
        %v259 = vld [vmem:[%s0] sm:$0xff]
        %v260 = vld [vmem:[%s0 + $0x8] sm:$0xff]
        %v261 = vld [vmem:[%s1] sm:$0xff]
        %v262 = vld [vmem:[%s1 + $0x8] sm:$0xff]
        %vm263 = vcmask 130048
        %v265 = vsel %vm263, %v259, 0
        %v268 = vsel %vm263, %v260, 0
        %270 = vmatprep.subr.mxu0 0.0
        %271 = vmatpush1.msra.mxu0 %v261
        %272 = vmatprep.subr.mxu0 0.0
        %273 = vmatpush1.msra.mxu0 %v262
        %274 = vmatprep.subr.mxu0 0.0
        %275 = vmatpush1.msra.mxu0 0.0
        %276 = vmatprep.subr.mxu0 0.0
        %277 = vmatpush1.msra.mxu0 0.0
        %278 = vmatprep.subr.mxu0 0.0
        %279 = vmatpush1.msra.mxu0 0.0
        %280 = vmatprep.subr.mxu0 0.0
        %281 = vmatpush1.msra.mxu0 0.0
        %282 = vmatprep.subr.mxu0 0.0
        %283 = vmatpush1.msra.mxu0 0.0
        %284 = vmatprep.subr.mxu0 0.0
        %285 = vmatpush1.msra.mxu0 0.0
        %286 = vmatprep.subr.mxu0 0.0
        %287 = vmatpush1.msra.mxu0 0.0
        %288 = vmatprep.subr.mxu0 0.0
        %289 = vmatpush1.msra.mxu0 0.0
        %290 = vmatprep.subr.mxu0 0.0
        %291 = vmatpush1.msra.mxu0 0.0
        %292 = vmatprep.subr.mxu0 0.0
        %293 = vmatpush1.msra.mxu0 0.0
        %294 = vmatprep.subr.mxu0 0.0
        %295 = vmatpush1.msra.mxu0 0.0
        %296 = vmatprep.subr.mxu0 0.0
        %297 = vmatpush1.msra.mxu0 0.0
        %298 = vmatprep.subr.mxu0 0.0
        %299 = vmatpush1.msra.mxu0 0.0
        %300 = vmatprep.subr.mxu0 0.0
        %301 = vmatpush1.msra.mxu0 0.0
        %302 = vmatprep.subr.mxu0 0.0
        %303 = vmatpush1.msra.mxu0 0.0
        %304 = vmatprep.subr.mxu0 0.0
        %305 = vmatpush1.msra.mxu0 0.0
        %306 = vmatprep.subr.mxu0 0.0
        %307 = vmatpush1.msra.mxu0 0.0
        %308 = vmatprep.subr.mxu0 0.0
        %309 = vmatpush1.msra.mxu0 0.0
        %310 = vmatprep.subr.mxu0 0.0
        %311 = vmatpush1.msra.mxu0 0.0
        %312 = vmatprep.subr.mxu0 0.0
        %313 = vmatpush1.msra.mxu0 0.0
        %314 = vmatprep.subr.mxu0 0.0
        %315 = vmatpush1.msra.mxu0 0.0
        %316 = vmatprep.subr.mxu0 0.0
        %317 = vmatpush1.msra.mxu0 0.0
        %318 = vmatprep.subr.mxu0 0.0
        %319 = vmatpush1.msra.mxu0 0.0
        %320 = vmatprep.subr.mxu0 0.0
        %321 = vmatpush1.msra.mxu0 0.0
        %322 = vmatprep.subr.mxu0 0.0
        %323 = vmatpush1.msra.mxu0 0.0
        %324 = vmatprep.subr.mxu0 0.0
        %325 = vmatpush1.msra.mxu0 0.0
        %326 = vmatprep.subr.mxu0 0.0
        %327 = vmatpush1.msra.mxu0 0.0
        %328 = vmatprep.subr.mxu0 0.0
        %329 = vmatpush1.msra.mxu0 0.0
        %330 = vmatprep.subr.mxu0 0.0
        %331 = vmatpush1.msra.mxu0 0.0
        %332 = vmatprep.subr.mxu0 0.0
        %333 = vmatpush1.msra.mxu0 0.0
        %334 = vmatprep.mubr.f32.mxu0 0.0
        %335 = vmatmul.mubr.f32.gmra.mrb[0].mxu0 %v265
        %v336 = vpop.f32.mrb[0].mxu0
        %v337 = vadd.f32 0.0, %v336
        %v338 = vpop.f32.mrb[0].mxu0
        %339 = vmatprep.mubr.f32.mxu0 0.0
        %340 = vmatmul.mubr.f32.gmra.mrb[0].mxu0 %v268
        %v341 = vpop.f32.mrb[0].mxu0
        %v342 = vadd.f32 0.0, %v341
        %v343 = vpop.f32.mrb[0].mxu0
        %344 = vdwg.mxu0
        %v347 = vcombine.high %v337, %v337
        %v349 = vunpack.c.l.s4 1966171168
        %v350 = vunpack.c.0.s8 %v349
        %v351 = vlaneseq
        %v352 = vshrl.u32 %v351, 7
        %v353 = vsub.s32 %v350, %v352
        %v354 = vrot.slane %v337, %v353
        %v356 = vunpack.c.l.s4 1966171168
        %v357 = vunpack.c.0.s8 %v356
        %v358 = vlaneseq
        %v359 = vshrl.u32 %v358, 7
        %v360 = vsub.s32 %v357, %v359
        %v361 = vrot.slane %v347, %v360
        %v362 = vcombine.high %v354, %v354
        %v363 = vcombine.high %v361, %v361
        %v365 = vunpack.c.l.s4 1966171168
        %v366 = vunpack.c.0.s8 %v365
        %v367 = vlaneseq
        %v368 = vshrl.u32 %v367, 7
        %v369 = vsub.s32 %v366, %v368
        %v370 = vrot.slane %v354, %v369
        %v372 = vunpack.c.l.s4 1966171168
        %v373 = vunpack.c.0.s8 %v372
        %v374 = vlaneseq
        %v375 = vshrl.u32 %v374, 7
        %v376 = vsub.s32 %v373, %v375
        %v377 = vrot.slane %v361, %v376
        %v379 = vunpack.c.l.s4 1966171168
        %v380 = vunpack.c.0.s8 %v379
        %v381 = vlaneseq
        %v382 = vshrl.u32 %v381, 7
        %v383 = vsub.s32 %v380, %v382
        %v384 = vrot.slane %v362, %v383
        %v386 = vunpack.c.l.s4 1966171168
        %v387 = vunpack.c.0.s8 %v386
        %v388 = vlaneseq
        %v389 = vshrl.u32 %v388, 7
        %v390 = vsub.s32 %v387, %v389
        %v391 = vrot.slane %v363, %v390
        %v392 = vcombine.high %v370, %v370
        %v393 = vcombine.high %v377, %v377
        %v394 = vcombine.high %v384, %v384
        %v395 = vcombine.high %v391, %v391
        %v396 = vcombine.high %v342, %v342
        %v398 = vunpack.c.l.s4 1966171168
        %v399 = vunpack.c.0.s8 %v398
        %v400 = vlaneseq
        %v401 = vshrl.u32 %v400, 7
        %v402 = vsub.s32 %v399, %v401
        %v403 = vrot.slane %v342, %v402
        %v405 = vunpack.c.l.s4 1966171168
        %v406 = vunpack.c.0.s8 %v405
        %v407 = vlaneseq
        %v408 = vshrl.u32 %v407, 7
        %v409 = vsub.s32 %v406, %v408
        %v410 = vrot.slane %v396, %v409
        %v411 = vcombine.high %v403, %v403
        %v412 = vcombine.high %v410, %v410
        %v414 = vunpack.c.l.s4 1966171168
        %v415 = vunpack.c.0.s8 %v414
        %v416 = vlaneseq
        %v417 = vshrl.u32 %v416, 7
        %v418 = vsub.s32 %v415, %v417
        %v419 = vrot.slane %v403, %v418
        %v421 = vunpack.c.l.s4 1966171168
        %v422 = vunpack.c.0.s8 %v421
        %v423 = vlaneseq
        %v424 = vshrl.u32 %v423, 7
        %v425 = vsub.s32 %v422, %v424
        %v426 = vrot.slane %v410, %v425
        %v428 = vunpack.c.l.s4 1966171168
        %v429 = vunpack.c.0.s8 %v428
        %v430 = vlaneseq
        %v431 = vshrl.u32 %v430, 7
        %v432 = vsub.s32 %v429, %v431
        %v433 = vrot.slane %v411, %v432
        %v435 = vunpack.c.l.s4 1966171168
        %v436 = vunpack.c.0.s8 %v435
        %v437 = vlaneseq
        %v438 = vshrl.u32 %v437, 7
        %v439 = vsub.s32 %v436, %v438
        %v440 = vrot.slane %v412, %v439
        %v441 = vcombine.high %v419, %v419
        %v442 = vcombine.high %v426, %v426
        %v443 = vcombine.high %v433, %v433
        %v444 = vcombine.high %v440, %v440
        %v445 = vlaneseq
        %v446 = vshrl.u32 %v445, 7
        %v447 = vsub.s32 0, %v446
        %v448 = vrot.slane %v370, %v447
        %v449 = vlaneseq
        %v450 = vshrl.u32 %v449, 7
        %v451 = vsub.s32 0, %v450
        %v452 = vrot.slane %v384, %v451
        %v453 = vlaneseq
        %v454 = vshrl.u32 %v453, 7
        %v455 = vsub.s32 0, %v454
        %v456 = vrot.slane %v392, %v455
        %v457 = vlaneseq
        %v458 = vshrl.u32 %v457, 7
        %v459 = vsub.s32 0, %v458
        %v460 = vrot.slane %v394, %v459
        %v461 = vlaneseq
        %v462 = vshrl.u32 %v461, 7
        %v463 = vsub.s32 0, %v462
        %v464 = vrot.slane %v377, %v463
        %v465 = vlaneseq
        %v466 = vshrl.u32 %v465, 7
        %v467 = vsub.s32 0, %v466
        %v468 = vrot.slane %v391, %v467
        %v469 = vlaneseq
        %v470 = vshrl.u32 %v469, 7
        %v471 = vsub.s32 0, %v470
        %v472 = vrot.slane %v393, %v471
        %v473 = vlaneseq
        %v474 = vshrl.u32 %v473, 7
        %v475 = vsub.s32 0, %v474
        %v476 = vrot.slane %v395, %v475
        %v477 = vlaneseq
        %v478 = vshrl.u32 %v477, 7
        %v479 = vsub.s32 0, %v478
        %v480 = vrot.slane %v419, %v479
        %v481 = vlaneseq
        %v482 = vshrl.u32 %v481, 7
        %v483 = vsub.s32 0, %v482
        %v484 = vrot.slane %v433, %v483
        %v485 = vlaneseq
        %v486 = vshrl.u32 %v485, 7
        %v487 = vsub.s32 0, %v486
        %v488 = vrot.slane %v441, %v487
        %v489 = vlaneseq
        %v490 = vshrl.u32 %v489, 7
        %v491 = vsub.s32 0, %v490
        %v492 = vrot.slane %v443, %v491
        %v493 = vlaneseq
        %v494 = vshrl.u32 %v493, 7
        %v495 = vsub.s32 0, %v494
        %v496 = vrot.slane %v426, %v495
        %v497 = vlaneseq
        %v498 = vshrl.u32 %v497, 7
        %v499 = vsub.s32 0, %v498
        %v500 = vrot.slane %v440, %v499
        %v501 = vlaneseq
        %v502 = vshrl.u32 %v501, 7
        %v503 = vsub.s32 0, %v502
        %v504 = vrot.slane %v442, %v503
        %v505 = vlaneseq
        %v506 = vshrl.u32 %v505, 7
        %v507 = vsub.s32 0, %v506
        %v508 = vrot.slane %v444, %v507
        %vm525 = vcmask 162816
        %526 = vst.msk [vmem:[%s258] sm:$0xff] %vm525, %v448
        %527 = vst.msk [vmem:[%s258 + $0x8] sm:$0xff] %vm525, %v452
        %528 = vst.msk [vmem:[%s258 + $0x10] sm:$0xff] %vm525, %v456
        %529 = vst.msk [vmem:[%s258 + $0x18] sm:$0xff] %vm525, %v460
        %530 = vst.msk [vmem:[%s258 + $0x20] sm:$0xff] %vm525, %v464
        %531 = vst.msk [vmem:[%s258 + $0x28] sm:$0xff] %vm525, %v468
        %532 = vst.msk [vmem:[%s258 + $0x30] sm:$0xff] %vm525, %v472
        %533 = vst.msk [vmem:[%s258 + $0x38] sm:$0xff] %vm525, %v476
        %534 = vst.msk [vmem:[%s258 + $0x40] sm:$0xff] %vm525, %v480
        %535 = vst.msk [vmem:[%s258 + $0x48] sm:$0xff] %vm525, %v484
        %536 = vst.msk [vmem:[%s258 + $0x50] sm:$0xff] %vm525, %v488
        %537 = vst.msk [vmem:[%s258 + $0x58] sm:$0xff] %vm525, %v492
        %538 = vst.msk [vmem:[%s258 + $0x60] sm:$0xff] %vm525, %v496
        %539 = vst.msk [vmem:[%s258 + $0x68] sm:$0xff] %vm525, %v500
        %540 = vst.msk [vmem:[%s258 + $0x70] sm:$0xff] %vm525, %v504
        %541 = vst.msk [vmem:[%s258 + $0x78] sm:$0xff] %vm525, %v508
        %v542 = vld [vmem:[%s239] sm:$0xff]
        %v543 = vld [vmem:[%s239 + $0x8] sm:$0xff]
        %v544 = vld [vmem:[%s239 + $0x10] sm:$0xff]
        %v545 = vld [vmem:[%s239 + $0x18] sm:$0xff]
        %v546 = vld [vmem:[%s239 + $0x20] sm:$0xff]
        %v547 = vld [vmem:[%s239 + $0x28] sm:$0xff]
        %v548 = vld [vmem:[%s239 + $0x30] sm:$0xff]
        %v549 = vld [vmem:[%s239 + $0x38] sm:$0xff]
        %v550 = vld [vmem:[%s239 + $0x40] sm:$0xff]
        %v551 = vld [vmem:[%s239 + $0x48] sm:$0xff]
        %v552 = vld [vmem:[%s239 + $0x50] sm:$0xff]
        %v553 = vld [vmem:[%s239 + $0x58] sm:$0xff]
        %v554 = vld [vmem:[%s239 + $0x60] sm:$0xff]
        %v555 = vld [vmem:[%s239 + $0x68] sm:$0xff]
        %v556 = vld [vmem:[%s239 + $0x70] sm:$0xff]
        %v557 = vld [vmem:[%s239 + $0x78] sm:$0xff]
        %559 = vset.pattern.permute.xlu0 0
        %560 = vperm.xlu0 %559, %v542
        %v561 = vpop.permute.xlu0 %560
        %564 = vset.pattern.permute.xlu0 0
        %565 = vperm.xlu0 %564, %v543
        %v566 = vpop.permute.xlu0 %565
        %569 = vset.pattern.permute.xlu0 0
        %570 = vperm.xlu0 %569, %v544
        %v571 = vpop.permute.xlu0 %570
        %574 = vset.pattern.permute.xlu0 0
        %575 = vperm.xlu0 %574, %v545
        %v576 = vpop.permute.xlu0 %575
        %579 = vset.pattern.permute.xlu0 0
        %580 = vperm.xlu0 %579, %v546
        %v581 = vpop.permute.xlu0 %580
        %584 = vset.pattern.permute.xlu0 0
        %585 = vperm.xlu0 %584, %v547
        %v586 = vpop.permute.xlu0 %585
        %589 = vset.pattern.permute.xlu0 0
        %590 = vperm.xlu0 %589, %v548
        %v591 = vpop.permute.xlu0 %590
        %594 = vset.pattern.permute.xlu0 0
        %595 = vperm.xlu0 %594, %v549
        %v596 = vpop.permute.xlu0 %595
        %599 = vset.pattern.permute.xlu0 0
        %600 = vperm.xlu0 %599, %v550
        %v601 = vpop.permute.xlu0 %600
        %604 = vset.pattern.permute.xlu0 0
        %605 = vperm.xlu0 %604, %v551
        %v606 = vpop.permute.xlu0 %605
        %609 = vset.pattern.permute.xlu0 0
        %610 = vperm.xlu0 %609, %v552
        %v611 = vpop.permute.xlu0 %610
        %614 = vset.pattern.permute.xlu0 0
        %615 = vperm.xlu0 %614, %v553
        %v616 = vpop.permute.xlu0 %615
        %619 = vset.pattern.permute.xlu0 0
        %620 = vperm.xlu0 %619, %v554
        %v621 = vpop.permute.xlu0 %620
        %624 = vset.pattern.permute.xlu0 0
        %625 = vperm.xlu0 %624, %v555
        %v626 = vpop.permute.xlu0 %625
        %629 = vset.pattern.permute.xlu0 0
        %630 = vperm.xlu0 %629, %v556
        %v631 = vpop.permute.xlu0 %630
        %634 = vset.pattern.permute.xlu0 0
        %635 = vperm.xlu0 %634, %v557
        %v636 = vpop.permute.xlu0 %635
        %s638 = scalar_lea.vmem %s258, 128 [#allocation3]
        %639 = vst.msk [vmem:[%s638] sm:$0xff] %vm525, %v561
        %640 = vst.msk [vmem:[%s638 + $0x8] sm:$0xff] %vm525, %v566
        %641 = vst.msk [vmem:[%s638 + $0x10] sm:$0xff] %vm525, %v571
        %642 = vst.msk [vmem:[%s638 + $0x18] sm:$0xff] %vm525, %v576
        %643 = vst.msk [vmem:[%s638 + $0x20] sm:$0xff] %vm525, %v581
        %644 = vst.msk [vmem:[%s638 + $0x28] sm:$0xff] %vm525, %v586
        %645 = vst.msk [vmem:[%s638 + $0x30] sm:$0xff] %vm525, %v591
        %646 = vst.msk [vmem:[%s638 + $0x38] sm:$0xff] %vm525, %v596
        %647 = vst.msk [vmem:[%s638 + $0x40] sm:$0xff] %vm525, %v601
        %648 = vst.msk [vmem:[%s638 + $0x48] sm:$0xff] %vm525, %v606
        %649 = vst.msk [vmem:[%s638 + $0x50] sm:$0xff] %vm525, %v611
        %650 = vst.msk [vmem:[%s638 + $0x58] sm:$0xff] %vm525, %v616
        %651 = vst.msk [vmem:[%s638 + $0x60] sm:$0xff] %vm525, %v621
        %652 = vst.msk [vmem:[%s638 + $0x68] sm:$0xff] %vm525, %v626
        %653 = vst.msk [vmem:[%s638 + $0x70] sm:$0xff] %vm525, %v631
        %654 = vst.msk [vmem:[%s638 + $0x78] sm:$0xff] %vm525, %v636
        %s655 = sand.u32 %s90, 1
        %s656 = sand.u32 %s90, 1
        %s657 = smul.addr %s656, 256
        %s658 = scalar_lea.vmem [#allocation3], %s657
        // Predicated region
        $region71: #{tpu_custom_call.1} parent=65 // pred_check
          %p659 = pneg %p100
        $region72: #{tpu_custom_call.1} parent=65 // pred_check_branch
          %661 = sbr.rel (%p659) target = $region74
        $region73: #{tpu_custom_call.1} parent=65 // pred_region
          %s662 = smul.addr %s14, 8
          %s663 = scalar_lea.vmem %s3, %s662
          // Predicated region
          $region75: #{tpu_custom_call.1} parent=73 // pred_check
            _
          $region76: #{tpu_custom_call.1} parent=73 // pred_check_branch
            %665 = sbr.rel (0) target = $region78
          $region77: #{tpu_custom_call.1} parent=73 // pred_region
            // Predicated region
            $region79: #{tpu_custom_call.1} parent=77 // pred_check
              _
            $region80: #{tpu_custom_call.1} parent=77 // pred_check_branch
              %667 = sbr.rel (0) target = $region82
            $region81: #{tpu_custom_call.1} parent=77 // pred_region
              // Predicated region
              $region94: #{tpu_custom_call.1} parent=81 // pred_check
                _
              $region95: #{tpu_custom_call.1} parent=81 // pred_check_branch
                %744 = sbr.rel (0) target = $region97
              $region96: #{tpu_custom_call.1} parent=81 // pred_region
                loop: start=0, step=1, limit=1
                $region98: #{tpu_custom_call.1} parent=96 // loop_pre_header
                  _
                $region99: #{tpu_custom_call.1} parent=96 // loop_header
                  %s746 = sphi 0, %s750
                  %p747 = scmp.ge.s32.totalorder %s746, 1
                  %s751 = sphi %s658, %s658
                  %s752 = sphi %s663, %s663
                $region100: #{tpu_custom_call.1} parent=96 // loop_header_branch
                  %749 = sbr.rel (%p747) target = $region104
                $region101: #{tpu_custom_call.1} parent=96 // loop_body
                  %v753 = vld [vmem:[%s751] sm:$0xff]
                  %754 = vst [vmem:[%s752] sm:$0xff] %v753
                  %v755 = vld [vmem:[%s751 + $0x8] sm:$0xff]
                  %756 = vst [vmem:[%s752 + $0x10] sm:$0xff] %v755
                  %v757 = vld [vmem:[%s751 + $0x10] sm:$0xff]
                  %758 = vst [vmem:[%s752 + $0x20] sm:$0xff] %v757
                  %v759 = vld [vmem:[%s751 + $0x18] sm:$0xff]
                  %760 = vst [vmem:[%s752 + $0x30] sm:$0xff] %v759
                  %v761 = vld [vmem:[%s751 + $0x20] sm:$0xff]
                  %762 = vst [vmem:[%s752 + $0x40] sm:$0xff] %v761
                  %v763 = vld [vmem:[%s751 + $0x28] sm:$0xff]
                  %764 = vst [vmem:[%s752 + $0x50] sm:$0xff] %v763
                  %v765 = vld [vmem:[%s751 + $0x30] sm:$0xff]
                  %766 = vst [vmem:[%s752 + $0x60] sm:$0xff] %v765
                  %v767 = vld [vmem:[%s751 + $0x38] sm:$0xff]
                  %768 = vst [vmem:[%s752 + $0x70] sm:$0xff] %v767
                  %v769 = vld [vmem:[%s751 + $0x40] sm:$0xff]
                  %770 = vst [vmem:[%s752 + $0x80] sm:$0xff] %v769
                  %v771 = vld [vmem:[%s751 + $0x48] sm:$0xff]
                  %772 = vst [vmem:[%s752 + $0x90] sm:$0xff] %v771
                  %v773 = vld [vmem:[%s751 + $0x50] sm:$0xff]
                  %774 = vst [vmem:[%s752 + $0xa0] sm:$0xff] %v773
                  %v775 = vld [vmem:[%s751 + $0x58] sm:$0xff]
                  %776 = vst [vmem:[%s752 + $0xb0] sm:$0xff] %v775
                  %v777 = vld [vmem:[%s751 + $0x60] sm:$0xff]
                  %778 = vst [vmem:[%s752 + $0xc0] sm:$0xff] %v777
                  %v779 = vld [vmem:[%s751 + $0x68] sm:$0xff]
                  %780 = vst [vmem:[%s752 + $0xd0] sm:$0xff] %v779
                  %v781 = vld [vmem:[%s751 + $0x70] sm:$0xff]
                  %782 = vst [vmem:[%s752 + $0xe0] sm:$0xff] %v781
                  %v783 = vld [vmem:[%s751 + $0x78] sm:$0xff]
                  %784 = vst [vmem:[%s752 + $0xf0] sm:$0xff] %v783
                  %v785 = vld [vmem:[%s751 + $0x80] sm:$0xff]
                  %786 = vst [vmem:[%s752 + $0x100] sm:$0xff] %v785
                  %v787 = vld [vmem:[%s751 + $0x88] sm:$0xff]
                  %788 = vst [vmem:[%s752 + $0x110] sm:$0xff] %v787
                  %v789 = vld [vmem:[%s751 + $0x90] sm:$0xff]
                  %790 = vst [vmem:[%s752 + $0x120] sm:$0xff] %v789
                  %v791 = vld [vmem:[%s751 + $0x98] sm:$0xff]
                  %792 = vst [vmem:[%s752 + $0x130] sm:$0xff] %v791
                  %v793 = vld [vmem:[%s751 + $0xa0] sm:$0xff]
                  %794 = vst [vmem:[%s752 + $0x140] sm:$0xff] %v793
                  %v795 = vld [vmem:[%s751 + $0xa8] sm:$0xff]
                  %796 = vst [vmem:[%s752 + $0x150] sm:$0xff] %v795
                  %v797 = vld [vmem:[%s751 + $0xb0] sm:$0xff]
                  %798 = vst [vmem:[%s752 + $0x160] sm:$0xff] %v797
                  %v799 = vld [vmem:[%s751 + $0xb8] sm:$0xff]
                  %800 = vst [vmem:[%s752 + $0x170] sm:$0xff] %v799
                  %v801 = vld [vmem:[%s751 + $0xc0] sm:$0xff]
                  %802 = vst [vmem:[%s752 + $0x180] sm:$0xff] %v801
                  %v803 = vld [vmem:[%s751 + $0xc8] sm:$0xff]
                  %804 = vst [vmem:[%s752 + $0x190] sm:$0xff] %v803
                  %v805 = vld [vmem:[%s751 + $0xd0] sm:$0xff]
                  %806 = vst [vmem:[%s752 + $0x1a0] sm:$0xff] %v805
                  %v807 = vld [vmem:[%s751 + $0xd8] sm:$0xff]
                  %808 = vst [vmem:[%s752 + $0x1b0] sm:$0xff] %v807
                  %v809 = vld [vmem:[%s751 + $0xe0] sm:$0xff]
                  %810 = vst [vmem:[%s752 + $0x1c0] sm:$0xff] %v809
                  %v811 = vld [vmem:[%s751 + $0xe8] sm:$0xff]
                  %812 = vst [vmem:[%s752 + $0x1d0] sm:$0xff] %v811
                  %v813 = vld [vmem:[%s751 + $0xf0] sm:$0xff]
                  %814 = vst [vmem:[%s752 + $0x1e0] sm:$0xff] %v813
                  %v815 = vld [vmem:[%s751 + $0xf8] sm:$0xff]
                  %816 = vst [vmem:[%s752 + $0x1f0] sm:$0xff] %v815
                $region102: #{tpu_custom_call.1} parent=96 // loop_footer
                  %s750 = sadd.s32 1, %s746
                $region103: #{tpu_custom_call.1} parent=96 // loop_footer_branch
                  %745 = sbr.rel target = $region99
                $region104: #{tpu_custom_call.1} parent=96 // loop_exit
                  _
              $region97: #{tpu_custom_call.1} parent=81 // pred_fallthru
                _
              // Predicated region
              $region105: #{tpu_custom_call.1} parent=81 // pred_check
                _
              $region106: #{tpu_custom_call.1} parent=81 // pred_check_branch
                %818 = sbr.rel target = $region108
              $region107: #{tpu_custom_call.1} parent=81 // pred_region
                _
              $region108: #{tpu_custom_call.1} parent=81 // pred_fallthru
                _
            $region82: #{tpu_custom_call.1} parent=77 // pred_fallthru
              _
            // Predicated region
            $region83: #{tpu_custom_call.1} parent=77 // pred_check
              _
            $region84: #{tpu_custom_call.1} parent=77 // pred_check_branch
              %669 = sbr.rel target = $region86
            $region85: #{tpu_custom_call.1} parent=77 // pred_region
              loop: start=0, step=1, limit=1
              $region87: #{tpu_custom_call.1} parent=85 // loop_pre_header
                _
              $region88: #{tpu_custom_call.1} parent=85 // loop_header
                %s672 = sphi 0, %s676
                %p673 = scmp.ge.s32.totalorder %s672, 1
                %s677 = sphi %s658, %s658
                %s678 = sphi %s663, %s663
              $region89: #{tpu_custom_call.1} parent=85 // loop_header_branch
                %675 = sbr.rel (%p673) target = $region93
              $region90: #{tpu_custom_call.1} parent=85 // loop_body
                %v679 = vld [vmem:[%s677] sm:$0xff]
                %680 = vst [vmem:[%s678] sm:$0xff] %v679
                %v681 = vld [vmem:[%s677 + $0x8] sm:$0xff]
                %682 = vst [vmem:[%s678 + $0x10] sm:$0xff] %v681
                %v683 = vld [vmem:[%s677 + $0x10] sm:$0xff]
                %684 = vst [vmem:[%s678 + $0x20] sm:$0xff] %v683
                %v685 = vld [vmem:[%s677 + $0x18] sm:$0xff]
                %686 = vst [vmem:[%s678 + $0x30] sm:$0xff] %v685
                %v687 = vld [vmem:[%s677 + $0x20] sm:$0xff]
                %688 = vst [vmem:[%s678 + $0x40] sm:$0xff] %v687
                %v689 = vld [vmem:[%s677 + $0x28] sm:$0xff]
                %690 = vst [vmem:[%s678 + $0x50] sm:$0xff] %v689
                %v691 = vld [vmem:[%s677 + $0x30] sm:$0xff]
                %692 = vst [vmem:[%s678 + $0x60] sm:$0xff] %v691
                %v693 = vld [vmem:[%s677 + $0x38] sm:$0xff]
                %694 = vst [vmem:[%s678 + $0x70] sm:$0xff] %v693
                %v695 = vld [vmem:[%s677 + $0x40] sm:$0xff]
                %696 = vst [vmem:[%s678 + $0x80] sm:$0xff] %v695
                %v697 = vld [vmem:[%s677 + $0x48] sm:$0xff]
                %698 = vst [vmem:[%s678 + $0x90] sm:$0xff] %v697
                %v699 = vld [vmem:[%s677 + $0x50] sm:$0xff]
                %700 = vst [vmem:[%s678 + $0xa0] sm:$0xff] %v699
                %v701 = vld [vmem:[%s677 + $0x58] sm:$0xff]
                %702 = vst [vmem:[%s678 + $0xb0] sm:$0xff] %v701
                %v703 = vld [vmem:[%s677 + $0x60] sm:$0xff]
                %704 = vst [vmem:[%s678 + $0xc0] sm:$0xff] %v703
                %v705 = vld [vmem:[%s677 + $0x68] sm:$0xff]
                %706 = vst [vmem:[%s678 + $0xd0] sm:$0xff] %v705
                %v707 = vld [vmem:[%s677 + $0x70] sm:$0xff]
                %708 = vst [vmem:[%s678 + $0xe0] sm:$0xff] %v707
                %v709 = vld [vmem:[%s677 + $0x78] sm:$0xff]
                %710 = vst [vmem:[%s678 + $0xf0] sm:$0xff] %v709
                %v711 = vld [vmem:[%s677 + $0x80] sm:$0xff]
                %712 = vst [vmem:[%s678 + $0x100] sm:$0xff] %v711
                %v713 = vld [vmem:[%s677 + $0x88] sm:$0xff]
                %714 = vst [vmem:[%s678 + $0x110] sm:$0xff] %v713
                %v715 = vld [vmem:[%s677 + $0x90] sm:$0xff]
                %716 = vst [vmem:[%s678 + $0x120] sm:$0xff] %v715
                %v717 = vld [vmem:[%s677 + $0x98] sm:$0xff]
                %718 = vst [vmem:[%s678 + $0x130] sm:$0xff] %v717
                %v719 = vld [vmem:[%s677 + $0xa0] sm:$0xff]
                %720 = vst [vmem:[%s678 + $0x140] sm:$0xff] %v719
                %v721 = vld [vmem:[%s677 + $0xa8] sm:$0xff]
                %722 = vst [vmem:[%s678 + $0x150] sm:$0xff] %v721
                %v723 = vld [vmem:[%s677 + $0xb0] sm:$0xff]
                %724 = vst [vmem:[%s678 + $0x160] sm:$0xff] %v723
                %v725 = vld [vmem:[%s677 + $0xb8] sm:$0xff]
                %726 = vst [vmem:[%s678 + $0x170] sm:$0xff] %v725
                %v727 = vld [vmem:[%s677 + $0xc0] sm:$0xff]
                %728 = vst [vmem:[%s678 + $0x180] sm:$0xff] %v727
                %v729 = vld [vmem:[%s677 + $0xc8] sm:$0xff]
                %730 = vst [vmem:[%s678 + $0x190] sm:$0xff] %v729
                %v731 = vld [vmem:[%s677 + $0xd0] sm:$0xff]
                %732 = vst [vmem:[%s678 + $0x1a0] sm:$0xff] %v731
                %v733 = vld [vmem:[%s677 + $0xd8] sm:$0xff]
                %734 = vst [vmem:[%s678 + $0x1b0] sm:$0xff] %v733
                %v735 = vld [vmem:[%s677 + $0xe0] sm:$0xff]
                %736 = vst [vmem:[%s678 + $0x1c0] sm:$0xff] %v735
                %v737 = vld [vmem:[%s677 + $0xe8] sm:$0xff]
                %738 = vst [vmem:[%s678 + $0x1d0] sm:$0xff] %v737
                %v739 = vld [vmem:[%s677 + $0xf0] sm:$0xff]
                %740 = vst [vmem:[%s678 + $0x1e0] sm:$0xff] %v739
                %v741 = vld [vmem:[%s677 + $0xf8] sm:$0xff]
                %742 = vst [vmem:[%s678 + $0x1f0] sm:$0xff] %v741
              $region91: #{tpu_custom_call.1} parent=85 // loop_footer
                %s676 = sadd.s32 1, %s672
              $region92: #{tpu_custom_call.1} parent=85 // loop_footer_branch
                %671 = sbr.rel target = $region88
              $region93: #{tpu_custom_call.1} parent=85 // loop_exit
                _
            $region86: #{tpu_custom_call.1} parent=77 // pred_fallthru
              _
          $region78: #{tpu_custom_call.1} parent=73 // pred_fallthru
            _
          %819 = vnop
        $region74: #{tpu_custom_call.1} parent=65 // pred_fallthru
          _
      $region66: #{tpu_custom_call.1} parent=5 // pred_fallthru
        _
      %p820 = scmp.le.s32.totalorder 2, %s9
      // Predicated region
      $region109: #{tpu_custom_call.1} parent=5 // pred_check
        %p821 = pneg %p820
      $region110: #{tpu_custom_call.1} parent=5 // pred_check_branch
        %823 = sbr.rel (%p821) target = $region112
      $region111: #{tpu_custom_call.1} parent=5 // pred_region
        %s824 = ssub.s32 %s9, 2
        // Predicated region
        $region113: #{tpu_custom_call.1} parent=111 // pred_check
          %p825 = pneg %p106
        $region114: #{tpu_custom_call.1} parent=111 // pred_check_branch
          %827 = sbr.rel (%p825) target = $region116
        $region115: #{tpu_custom_call.1} parent=111 // pred_region
          %s828 = sand.u32 %s91, 1
          %s829 = sand.u32 %s91, 1
          %s830 = smul.addr %s829, 256
          %s831 = scalar_lea.vmem [#allocation3], %s830
        $region116: #{tpu_custom_call.1} parent=111 // pred_fallthru
          _
      $region112: #{tpu_custom_call.1} parent=5 // pred_fallthru
        _
    $region6: #{tpu_custom_call.1} parent=1 // loop_footer
      %s13 = sadd.s32 1, %s9
    $region7: #{tpu_custom_call.1} parent=1 // loop_footer_branch
      %8 = sbr.rel target = $region3
    $region8: #{tpu_custom_call.1} parent=1 // loop_exit
      _

</llo_original>
